<compile_context>
chip_gen: v6e
topology: v6e:2x2x1
jax: 0.10.0
libtpu: 0.0.40
codegen_flags: <defaults>
</compile_context>

<pallas_src>
import functools

import jax
import jax.numpy as jnp
from jax.experimental import pallas as pl
from jax.experimental.pallas import tpu as pltpu

LANES = 128
SUBLANES = 8
MAX_BLOCK_ROWS = 2048  # 2048*128*4B = 1 MiB per input per step


def _sq_err_sums_kernel(*args, num_preds, total_rows, block_rows,
                        blocks_per_split, needs_mask):
    """Accumulate sum((pred - target)^2) per prediction into per-split slabs.

    args = (pred_refs..., target_ref, out_refs...)
    out_refs[p] has block shape (1, 8, 128) and is resident across the inner
    (reduction) grid axis -> it is the accumulator.
    """
    pred_refs = args[:num_preds]
    t_ref = args[num_preds]
    out_refs = args[num_preds + 1:]

    c = pl.program_id(0)   # split across TensorCores ("parallel")
    i = pl.program_id(1)   # reduction steps ("arbitrary")

    @pl.when(i == 0)
    def _():
        for out in out_refs:
            out[...] = jnp.zeros_like(out)

    t = t_ref[...]

    if needs_mask:
        # Mask rows of the (possibly partial) last block.  Static shapes only.
        row0 = (c * blocks_per_split + i) * block_rows
        row_ids = row0 + jax.lax.broadcasted_iota(
            jnp.int32, (block_rows, LANES), 0)
        mask = row_ids < total_rows

    for p in range(num_preds):
        d = pred_refs[p][...] - t
        d2 = d * d
        if needs_mask:
            d2 = jnp.where(mask, d2, jnp.float32(0.0))
        # Reduce over the leading (major) axis only: pure VPU vreg adds,
        # no cross-lane XLU work per step.
        partial = d2.reshape(block_rows // SUBLANES, SUBLANES, LANES).sum(axis=0)
        out_refs[p][0] += partial


def _lane_pack(x):
    """Flatten to f32 1D and view as (rows, 128); pad only if unaligned."""
    flat = x.reshape(-1).astype(jnp.float32)
    n = flat.shape[0]
    tile = SUBLANES * LANES
    padded = -(-n // tile) * tile
    if padded != n:
        # Zero padding on BOTH operands is sum-neutral for squared error.
        flat = jnp.pad(flat, (0, padded - n))
    return flat.reshape(padded // LANES, LANES)


def _sq_err_sums(preds, target):
    """Return [sum((p - target)**2) for p in preds] via one fused Pallas call."""
    num_preds = len(preds)
    t2d = _lane_pack(target)
    p2d = [_lane_pack(p) for p in preds]
    rows = t2d.shape[0]                       # multiple of 8, static

    block_rows = min(MAX_BLOCK_ROWS, rows)    # multiple of 8
    nblocks = -(-rows // block_rows)
    # Split across the 2 TensorCores (v7x) only when it divides evenly, so the
    # index_map never produces a fully out-of-range block.
    num_splits = 2 if (nblocks % 2 == 0) else 1
    spc = nblocks // num_splits
    needs_mask = (rows % block_rows) != 0

    kernel = functools.partial(
        _sq_err_sums_kernel,
        num_preds=num_preds,
        total_rows=rows,
        block_rows=block_rows,
        blocks_per_split=spc,
        needs_mask=needs_mask,
    )

    in_spec = pl.BlockSpec((block_rows, LANES), lambda c, i: (c * spc + i, 0))
    out_spec = pl.BlockSpec((1, SUBLANES, LANES), lambda c, i: (c, 0, 0))

    bytes_accessed = (num_preds + 1) * rows * LANES * 4 \
        + num_preds * num_splits * SUBLANES * LANES * 4
    cost = pl.CostEstimate(
        flops=3 * num_preds * rows * LANES,
        transcendentals=0,
        bytes_accessed=bytes_accessed,
    )

    outs = pl.pallas_call(
        kernel,
        out_shape=tuple(
            jax.ShapeDtypeStruct((num_splits, SUBLANES, LANES), jnp.float32)
            for _ in range(num_preds)
        ),
        grid_spec=pltpu.PrefetchScalarGridSpec(
            num_scalar_prefetch=0,
            grid=(num_splits, spc),
            in_specs=[in_spec] * num_preds + [in_spec],
            out_specs=tuple(out_spec for _ in range(num_preds)),
        ),
        compiler_params=pltpu.CompilerParams(
            dimension_semantics=("parallel", "arbitrary"),
            vmem_limit_bytes=32 * 1024 * 1024,
        ),
        cost_estimate=cost,
    )(*p2d, t2d)

    if not isinstance(outs, (tuple, list)):
        outs = (outs,)
    # One cheap cross-lane reduce per prediction, done once outside the loop.
    return [jnp.sum(o) for o in outs]


def color_loss(inputs, targets, coef=1.0):
    """JAX/Pallas equivalent of ColorLoss.forward."""
    preds = [inputs["rgb_coarse"]]
    if "rgb_fine" in inputs:
        preds.append(inputs["rgb_fine"])
    sums = _sq_err_sums(preds, targets)
    numel = targets.size  # same shape for every prediction -> shared divisor
    loss = sum(sums) / jnp.float32(numel)
    return jnp.float32(coef) * loss


if __name__ == "__main__":
    key = jax.random.PRNGKey(0)
    k1, k2, k3 = jax.random.split(key, 3)

    n_rays = 128  # small synthetic batch of rays, (N_rays, 3) rgb
    rgb_coarse = jax.random.uniform(k1, (n_rays, 3), dtype=jnp.float32)
    rgb_fine = jax.random.uniform(k2, (n_rays, 3), dtype=jnp.float32)
    targets = jax.random.uniform(k3, (n_rays, 3), dtype=jnp.float32)

    inputs = {"rgb_coarse": rgb_coarse, "rgb_fine": rgb_fine}

    @jax.jit
    def loss_fn(inp, tgt):
        return color_loss(inp, tgt, coef=1.0)

    out = loss_fn(inputs, targets)
    out = jax.block_until_ready(out)

    # Reference check in plain JAX.
    ref = jnp.mean((rgb_coarse - targets) ** 2) + jnp.mean((rgb_fine - targets) ** 2)
    assert jnp.allclose(out, ref, rtol=1e-5, atol=1e-6), (out, ref)

    # Also check the coarse-only path (no 'rgb_fine').
    out_c = jax.block_until_ready(color_loss({"rgb_coarse": rgb_coarse}, targets))
    ref_c = jnp.mean((rgb_coarse - targets) ** 2)
    assert jnp.allclose(out_c, ref_c, rtol=1e-5, atol=1e-6), (out_c, ref_c)

    print("KERNEL_OK")
</pallas_src>

<mosaic_0001>
module attributes {stable_mosaic.version = 11 : i64} {
  func.func @_sq_err_sums_kernel(%arg0: i32, %arg1: i32, %arg2: memref<8x128xf32, #tpu.memory_space<vmem>>, %arg3: memref<8x128xf32, #tpu.memory_space<vmem>>, %arg4: memref<8x128xf32, #tpu.memory_space<vmem>>, %arg5: memref<1x8x128xf32, #tpu.memory_space<vmem>>, %arg6: memref<1x8x128xf32, #tpu.memory_space<vmem>>) attributes {dimension_semantics = [#tpu.dimension_semantics<parallel>, #tpu.dimension_semantics<arbitrary>], iteration_bounds = array<i64: 1, 1>, scalar_prefetch = 0 : i64, scratch_operands = 0 : i64, tpu.core_type = #tpu.core_type<tc>, window_params = [{transform_indices = @transform_0, window_bounds = array<i64: 8, 128>}, {transform_indices = @transform_1, window_bounds = array<i64: 8, 128>}, {transform_indices = @transform_2, window_bounds = array<i64: 8, 128>}, {transform_indices = @transform_3, window_bounds = array<i64: 1, 8, 128>}, {transform_indices = @transform_4, window_bounds = array<i64: 1, 8, 128>}]} {
    %c0_i32 = arith.constant 0 : i32
    %0 = arith.cmpi eq, %arg1, %c0_i32 : i32
    %1 = arith.extui %0 : i1 to i32
    %c0_i32_0 = arith.constant 0 : i32
    %2 = arith.cmpi ne, %1, %c0_i32_0 : i32
    scf.if %2 {
      %cst_19 = arith.constant 0.000000e+00 : f32
      %26 = vector.broadcast %cst_19 : f32 to vector<1x8x128xf32>
      %c0_20 = arith.constant 0 : index
      %c0_21 = arith.constant 0 : index
      %c0_22 = arith.constant 0 : index
      %27 = vector.load %arg5[%c0_20, %c0_21, %c0_22] : memref<1x8x128xf32, #tpu.memory_space<vmem>>, vector<1x8x128xf32>
      tpu.vector_store %arg5[%c0_20, %c0_21, %c0_22], %26 {strides = array<i32>} : memref<1x8x128xf32, #tpu.memory_space<vmem>>, vector<1x8x128xf32>,
      %cst_23 = arith.constant 0.000000e+00 : f32
      %28 = vector.broadcast %cst_23 : f32 to vector<1x8x128xf32>
      %c0_24 = arith.constant 0 : index
      %c0_25 = arith.constant 0 : index
      %c0_26 = arith.constant 0 : index
      %29 = vector.load %arg6[%c0_24, %c0_25, %c0_26] : memref<1x8x128xf32, #tpu.memory_space<vmem>>, vector<1x8x128xf32>
      tpu.vector_store %arg6[%c0_24, %c0_25, %c0_26], %28 {strides = array<i32>} : memref<1x8x128xf32, #tpu.memory_space<vmem>>, vector<1x8x128xf32>,
    } else {
    }
    %c0 = arith.constant 0 : index
    %c0_1 = arith.constant 0 : index
    %3 = vector.load %arg4[%c0, %c0_1] : memref<8x128xf32, #tpu.memory_space<vmem>>, vector<8x128xf32>
    %c0_2 = arith.constant 0 : index
    %c0_3 = arith.constant 0 : index
    %4 = vector.load %arg2[%c0_2, %c0_3] : memref<8x128xf32, #tpu.memory_space<vmem>>, vector<8x128xf32>
    %5 = arith.subf %4, %3 : vector<8x128xf32>
    %6 = arith.mulf %5, %5 : vector<8x128xf32>
    %7 = vector.shape_cast %6 : vector<8x128xf32> to vector<1x8x128xf32>
    %cst = arith.constant dense<0.000000e+00> : vector<8x128xf32>
    %8 = vector.multi_reduction <add>, %7, %cst [0] : vector<1x8x128xf32> to vector<8x128xf32>
    %c0_4 = arith.constant 0 : index
    %c0_5 = arith.constant 0 : index
    %c0_6 = arith.constant 0 : index
    %9 = vector.load %arg5[%c0_4, %c0_5, %c0_6] : memref<1x8x128xf32, #tpu.memory_space<vmem>>, vector<1x8x128xf32>
    %10 = vector.shape_cast %9 : vector<1x8x128xf32> to vector<8x128xf32>
    %11 = arith.addf %10, %8 : vector<8x128xf32>
    %c0_7 = arith.constant 0 : index
    %c0_8 = arith.constant 0 : index
    %c0_9 = arith.constant 0 : index
    %12 = vector.load %arg5[%c0_7, %c0_8, %c0_9] : memref<1x8x128xf32, #tpu.memory_space<vmem>>, vector<1x8x128xf32>
    %13 = vector.shape_cast %12 : vector<1x8x128xf32> to vector<8x128xf32>
    %14 = vector.shape_cast %11 : vector<8x128xf32> to vector<1x8x128xf32>
    tpu.vector_store %arg5[%c0_7, %c0_8, %c0_9], %14 {strides = array<i32>} : memref<1x8x128xf32, #tpu.memory_space<vmem>>, vector<1x8x128xf32>,
    %c0_10 = arith.constant 0 : index
    %c0_11 = arith.constant 0 : index
    %15 = vector.load %arg3[%c0_10, %c0_11] : memref<8x128xf32, #tpu.memory_space<vmem>>, vector<8x128xf32>
    %16 = arith.subf %15, %3 : vector<8x128xf32>
    %17 = arith.mulf %16, %16 : vector<8x128xf32>
    %18 = vector.shape_cast %17 : vector<8x128xf32> to vector<1x8x128xf32>
    %cst_12 = arith.constant dense<0.000000e+00> : vector<8x128xf32>
    %19 = vector.multi_reduction <add>, %18, %cst_12 [0] : vector<1x8x128xf32> to vector<8x128xf32>
    %c0_13 = arith.constant 0 : index
    %c0_14 = arith.constant 0 : index
    %c0_15 = arith.constant 0 : index
    %20 = vector.load %arg6[%c0_13, %c0_14, %c0_15] : memref<1x8x128xf32, #tpu.memory_space<vmem>>, vector<1x8x128xf32>
    %21 = vector.shape_cast %20 : vector<1x8x128xf32> to vector<8x128xf32>
    %22 = arith.addf %21, %19 : vector<8x128xf32>
    %c0_16 = arith.constant 0 : index
    %c0_17 = arith.constant 0 : index
    %c0_18 = arith.constant 0 : index
    %23 = vector.load %arg6[%c0_16, %c0_17, %c0_18] : memref<1x8x128xf32, #tpu.memory_space<vmem>>, vector<1x8x128xf32>
    %24 = vector.shape_cast %23 : vector<1x8x128xf32> to vector<8x128xf32>
    %25 = vector.shape_cast %22 : vector<8x128xf32> to vector<1x8x128xf32>
    tpu.vector_store %arg6[%c0_16, %c0_17, %c0_18], %25 {strides = array<i32>} : memref<1x8x128xf32, #tpu.memory_space<vmem>>, vector<1x8x128xf32>,
    return
  }
  func.func @transform_0(%arg0: i32, %arg1: i32) -> (i32, i32) {
    %c1_i32 = arith.constant 1 : i32
    %0 = arith.muli %arg0, %c1_i32 : i32
    %1 = arith.addi %0, %arg1 : i32
    %c0_i32 = arith.constant 0 : i32
    %c0_i32_0 = arith.constant 0 : i32
    return %1, %c0_i32 : i32, i32
  }
  func.func @transform_1(%arg0: i32, %arg1: i32) -> (i32, i32) {
    %c1_i32 = arith.constant 1 : i32
    %0 = arith.muli %arg0, %c1_i32 : i32
    %1 = arith.addi %0, %arg1 : i32
    %c0_i32 = arith.constant 0 : i32
    %c0_i32_0 = arith.constant 0 : i32
    return %1, %c0_i32 : i32, i32
  }
  func.func @transform_2(%arg0: i32, %arg1: i32) -> (i32, i32) {
    %c1_i32 = arith.constant 1 : i32
    %0 = arith.muli %arg0, %c1_i32 : i32
    %1 = arith.addi %0, %arg1 : i32
    %c0_i32 = arith.constant 0 : i32
    %c0_i32_0 = arith.constant 0 : i32
    return %1, %c0_i32 : i32, i32
  }
  func.func @transform_3(%arg0: i32, %arg1: i32) -> (i32, i32, i32) {
    %c0_i32 = arith.constant 0 : i32
    %c0_i32_0 = arith.constant 0 : i32
    %c0_i32_1 = arith.constant 0 : i32
    return %arg0, %c0_i32, %c0_i32_0 : i32, i32, i32
  }
  func.func @transform_4(%arg0: i32, %arg1: i32) -> (i32, i32, i32) {
    %c0_i32 = arith.constant 0 : i32
    %c0_i32_0 = arith.constant 0 : i32
    %c0_i32_1 = arith.constant 0 : i32
    return %arg0, %c0_i32, %c0_i32_0 : i32, i32, i32
  }
}

</mosaic_0001>

<llo_original>
// kernel: loss_fn.1
$region0: #{loss_fn.1}
  #allocation0 [shape = 'u32[]', space=smem, size = 0x4, offset = 0x4, fixed_abs, tag = 'smem constant byte address 0x4 - core index']
  #allocation1 [shape = 'u32[144,128]{1,0:T(1,128)}', space=vmem, size = 0x12000, scoped, tag = 'internal scratch']
  %s0 = inlined_call_operand.vmem [shape: f32[8,128], index: 0, kind: input, shape index: {}]
  %s1 = inlined_call_operand.vmem [shape: f32[8,128], index: 1, kind: input, shape index: {}]
  %s2 = inlined_call_operand.vmem [shape: f32[8,128], index: 2, kind: input, shape index: {}]
  %s3 = inlined_call_operand.vmem [shape: f32[1,8,128], index: 3, kind: output, shape index: {0}]
  %s4 = inlined_call_operand.vmem [shape: f32[1,8,128], index: 4, kind: output, shape index: {1}]
  %5 = xla_tuple %s3, %s4
  %s6 = sld [smem:[#allocation0]]
  $region34: #{loss_fn.1} parent=0
    _
  %s8 = ssub.s32 1, %s6
  %s9 = scalar_select 0, %s8, %s6
  // Predicated region
  $region2: #{loss_fn.1} parent=0 // pred_check
    _
  $region3: #{loss_fn.1} parent=0 // pred_check_branch
    %11 = sbr.rel (0) target = $region5
  $region4: #{loss_fn.1} parent=0 // pred_region
    %s12 = sadd.s32 0, 0
    %p13 = scmp.lt.s32.totalorder %s12, 0
    %s14 = scalar_select %p13, %s12, 0
    %s15 = smul.addr %s14, 8
    %s16 = scalar_lea.vmem %s0, %s15
    %s17 = sadd.s32 0, 0
  $region5: #{loss_fn.1} parent=0 // pred_fallthru
    _
  // Predicated region
  $region6: #{loss_fn.1} parent=0 // pred_check
    _
  $region7: #{loss_fn.1} parent=0 // pred_check_branch
    %19 = sbr.rel (0) target = $region9
  $region8: #{loss_fn.1} parent=0 // pred_region
    %s20 = sadd.s32 0, 0
    %p21 = scmp.lt.s32.totalorder %s20, 0
    %s22 = scalar_select %p21, %s20, 0
    %s23 = smul.addr %s22, 8
    %s24 = scalar_lea.vmem %s1, %s23
    %s25 = sadd.s32 0, 0
  $region9: #{loss_fn.1} parent=0 // pred_fallthru
    _
  // Predicated region
  $region10: #{loss_fn.1} parent=0 // pred_check
    _
  $region11: #{loss_fn.1} parent=0 // pred_check_branch
    %27 = sbr.rel (0) target = $region13
  $region12: #{loss_fn.1} parent=0 // pred_region
    %s28 = sadd.s32 0, 0
    %p29 = scmp.lt.s32.totalorder %s28, 0
    %s30 = scalar_select %p29, %s28, 0
    %s31 = smul.addr %s30, 8
    %s32 = scalar_lea.vmem %s2, %s31
    %s33 = sadd.s32 0, 0
  $region13: #{loss_fn.1} parent=0 // pred_fallthru
    _
  %s34 = sadd.s32 0, 0
  %p35 = scmp.lt.s32.totalorder %s34, 0
  %s36 = scalar_select %p35, %s34, 0
  %s37 = smul.addr %s36, 8
  %s38 = scalar_lea.vmem %s0, %s37
  %s39 = sadd.s32 0, 0
  %p40 = scmp.lt.s32.totalorder %s39, 0
  %s41 = scalar_select %p40, %s39, 0
  %s42 = smul.addr %s41, 8
  %s43 = scalar_lea.vmem %s1, %s42
  %s44 = sadd.s32 0, 0
  %p45 = scmp.lt.s32.totalorder %s44, 0
  %s46 = scalar_select %p45, %s44, 0
  %s47 = smul.addr %s46, 8
  %s48 = scalar_lea.vmem %s2, %s47
  %s49 = sadd.s32 0, 0
  %p50 = scmp.lt.s32.totalorder %s49, 0
  %s51 = scalar_select %p50, %s49, 0
  %s52 = smul.addr %s51, 8
  %s53 = scalar_lea.vmem %s0, %s52
  %s54 = sadd.s32 0, 0
  %s55 = sadd.s32 0, 0
  %p56 = scmp.lt.s32.totalorder %s55, 0
  %s57 = scalar_select %p56, %s55, 0
  %s58 = smul.addr %s57, 8
  %s59 = scalar_lea.vmem %s1, %s58
  %s60 = sadd.s32 0, 0
  %s61 = sadd.s32 0, 0
  %p62 = scmp.lt.s32.totalorder %s61, 0
  %s63 = scalar_select %p62, %s61, 0
  %s64 = smul.addr %s63, 8
  %s65 = scalar_lea.vmem %s2, %s64
  %s66 = sadd.s32 0, 0
  %p67 = scmp.eq.s32.totalorder 0, 0
  // Predicated region
  $region14: #{loss_fn.1} parent=0 // pred_check
    %p68 = pneg %p67
  $region15: #{loss_fn.1} parent=0 // pred_check_branch
    %70 = sbr.rel (%p68) target = $region17
  $region16: #{loss_fn.1} parent=0 // pred_region
    %71 = vst [vmem:[%s3] sm:$0xff] 0.0
    %72 = vst [vmem:[%s4] sm:$0xff] 0.0
  $region17: #{loss_fn.1} parent=0 // pred_fallthru
    _
  %v73 = vld [vmem:[%s65] sm:$0xff]
  %v74 = vld [vmem:[%s53] sm:$0xff]
  %v75 = vsub.f32 %v74, %v73
  %v76 = vmul.f32 %v75, %v75
  %v77 = vadd.f32 %v76, 0.0
  %v78 = vld [vmem:[%s3] sm:$0xff]
  %v79 = vadd.f32 %v78, %v77
  %80 = vst [vmem:[%s3] sm:$0xff] %v79
  %v81 = vld [vmem:[%s59] sm:$0xff]
  %v82 = vsub.f32 %v81, %v73
  %v83 = vmul.f32 %v82, %v82
  %v84 = vadd.f32 %v83, 0.0
  %v85 = vld [vmem:[%s4] sm:$0xff]
  %v86 = vadd.f32 %v85, %v84
  %87 = vst [vmem:[%s4] sm:$0xff] %v86
  // Predicated region
  $region18: #{loss_fn.1} parent=0 // pred_check
    _
  $region19: #{loss_fn.1} parent=0 // pred_check_branch
    %89 = sbr.rel (0) target = $region21
  $region20: #{loss_fn.1} parent=0 // pred_region
    _
  $region21: #{loss_fn.1} parent=0 // pred_fallthru
    _
  // Predicated region
  $region22: #{loss_fn.1} parent=0 // pred_check
    _
  $region23: #{loss_fn.1} parent=0 // pred_check_branch
    %91 = sbr.rel (0) target = $region25
  $region24: #{loss_fn.1} parent=0 // pred_region
    _
  $region25: #{loss_fn.1} parent=0 // pred_fallthru
    _
  // Predicated region
  $region26: #{loss_fn.1} parent=0 // pred_check
    _
  $region27: #{loss_fn.1} parent=0 // pred_check_branch
    %93 = sbr.rel (0) target = $region29
  $region28: #{loss_fn.1} parent=0 // pred_region
    _
  $region29: #{loss_fn.1} parent=0 // pred_fallthru
    _
  // Predicated region
  $region30: #{loss_fn.1} parent=0 // pred_check
    _
  $region31: #{loss_fn.1} parent=0 // pred_check_branch
    %95 = sbr.rel (0) target = $region33
  $region32: #{loss_fn.1} parent=0 // pred_region
    _
  $region33: #{loss_fn.1} parent=0 // pred_fallthru
    _

</llo_original>
